<compile_context>
chip_gen: v6e
topology: v6e:2x2x1
jax: 0.10.0
libtpu: 0.0.40
codegen_flags: <defaults>
</compile_context>

<pallas_src>
import jax
import jax.numpy as jnp
from jax.experimental import pallas as pl
from jax.experimental.pallas import tpu as pltpu


# ----------------------------------------------------------------------------- kernel
def _fused_deconv_bn_relu_kernel(x_ref, w_ref, shift_ref, o_ref):
    # x_ref:     (tm, Kp)        rows = flattened (N*H*W) pixels (zero-padded)
    # w_ref:     (Kp, 4*Cp)      columns ordered (kh, kw, co); BN scale pre-folded
    # shift_ref: (1, 4*Cp)       BN shift, broadcast over rows (f32)
    # o_ref:     (tm, 4*Cp)      lane-dense (4*Cp multiple of 128)
    y = jnp.dot(x_ref[...], w_ref[...], preferred_element_type=jnp.float32)
    y = y + shift_ref[...]
    o_ref[...] = jnp.maximum(y, 0.0).astype(o_ref.dtype)


# ----------------------------------------------------------------------------- tiling
def _pick_row_tile(M, k_lanes, out_cols, vmem_budget_bytes=24 << 20):
    """Largest row tile whose double-buffered footprint fits the budget."""
    def footprint(tm):
        x_bytes = 2 * tm * max(k_lanes, 128) * 4          # lane-padded, double-buffered
        o_bytes = 2 * tm * out_cols * 4
        w_bytes = 2 * max(k_lanes, 8) * out_cols * 4
        s_bytes = 2 * out_cols * 4
        return x_bytes + o_bytes + w_bytes + s_bytes

    cands = [t for t in (2048, 1024, 512, 256, 128) if footprint(t) <= vmem_budget_bytes]
    if not cands:
        cands = [128]
    for t in cands:                       # prefer >= 2 grid steps (pipelining / megacore)
        if M % t == 0 and M // t >= 2:
            return t
    for t in cands:
        if M % t == 0:
            return t
    for t in cands:                       # no divisor: pad, but keep padding < tile
        if t <= M:
            return t
    return cands[-1]


# ----------------------------------------------------------------------------- wrapper
def conv_transpose2d_block(x_nchw, weight, gamma, beta, running_mean, running_var,
                           eps=1e-5, compute_dtype=jnp.float32):
    """x_nchw: (N, Cin, H, W) float32.
    weight:  (Cin, Cout, 2, 2)   (PyTorch ConvTranspose2d weight layout)
    Returns  (N, Cout, 2H, 2W) float32."""
    N, Cin, H, W = x_nchw.shape
    Cout = weight.shape[1]
    assert weight.shape[2:] == (2, 2), "this kernel specializes kernel_size=stride=2"

    # Padded channel sizes: lane-dense output (4*Cp % 128 == 0), K padded to mult of 8.
    Cp = -(-Cout // 32) * 32
    Kp = max(8, -(-Cin // 8) * 8)

    # ---- input rows: NCHW -> (M, Kp)  (transpose + pad + cast fuse in XLA) --------
    M = N * H * W
    x_rows = jnp.transpose(x_nchw, (0, 2, 3, 1)).reshape(M, Cin)
    if Kp != Cin:
        x_rows = jnp.pad(x_rows, ((0, 0), (0, Kp - Cin)))
    x_rows = x_rows.astype(compute_dtype)

    # ---- weight: fold BN scale, pad, flatten to (Kp, 4*Cp) ------------------------
    bn_scale = gamma / jnp.sqrt(running_var + eps)          # (Cout,)
    bn_shift = beta - running_mean * bn_scale               # (Cout,)
    w = jnp.transpose(weight, (0, 2, 3, 1)) * bn_scale      # (Cin, 2, 2, Cout), scaled
    w = jnp.pad(w, ((0, Kp - Cin), (0, 0), (0, 0), (0, Cp - Cout)))
    w_mat = w.reshape(Kp, 4 * Cp).astype(compute_dtype)

    shift_row = jnp.tile(jnp.pad(bn_shift, (0, Cp - Cout)), 4)
    shift_row = shift_row.reshape(1, 4 * Cp).astype(jnp.float32)

    # ---- row tiling (pad M to a multiple of tm instead of tm=M fallback) ----------
    tm = _pick_row_tile(M, Kp, 4 * Cp)
    Mp = -(-M // tm) * tm
    if Mp != M:
        x_rows = jnp.pad(x_rows, ((0, Mp - M), (0, 0)))
    grid = (Mp // tm,)

    # ---- Pallas call ----------------------------------------------------------------
    y_rows = pl.pallas_call(
        _fused_deconv_bn_relu_kernel,
        out_shape=jax.ShapeDtypeStruct((Mp, 4 * Cp), jnp.float32),
        grid_spec=pltpu.PrefetchScalarGridSpec(
            num_scalar_prefetch=0,
            grid=grid,
            in_specs=[
                pl.BlockSpec((tm, Kp), lambda i: (i, 0)),
                pl.BlockSpec((Kp, 4 * Cp), lambda i: (0, 0)),
                pl.BlockSpec((1, 4 * Cp), lambda i: (0, 0)),
            ],
            out_specs=pl.BlockSpec((tm, 4 * Cp), lambda i: (i, 0)),
        ),
        compiler_params=pltpu.CompilerParams(
            dimension_semantics=("parallel",),
            vmem_limit_bytes=48 * 1024 * 1024),
    )(x_rows, w_mat, shift_row)

    # ---- single fused slice + transpose straight into NCHW ---------------------------
    # (M, 4*Cp) -> (N, H, W, kh, kw, Cp) -> slice co -> (N, Cout, H, kh, W, kw)
    y = y_rows[:M].reshape(N, H, W, 2, 2, Cp)[..., :Cout]
    y = jnp.transpose(y, (0, 5, 1, 3, 2, 4)).reshape(N, Cout, 2 * H, 2 * W)
    return y


# ----------------------------------------------------------------------------- reference
def _reference(x_nchw, weight, gamma, beta, running_mean, running_var, eps=1e-5):
    """Pure-JAX reference (same math, no Pallas)."""
    N, Cin, H, W = x_nchw.shape
    Cout = weight.shape[1]
    # out[n, co, 2h+kh, 2w+kw] = sum_ci x[n, ci, h, w] * W[ci, co, kh, kw]
    y = jnp.einsum("nihw,iokl->nohkwl", x_nchw, weight)
    y = y.reshape(N, Cout, 2 * H, 2 * W)
    scale = (gamma / jnp.sqrt(running_var + eps)).reshape(1, Cout, 1, 1)
    shift = (beta - running_mean * gamma / jnp.sqrt(running_var + eps)).reshape(1, Cout, 1, 1)
    return jnp.maximum(y * scale + shift, 0.0)


if __name__ == "__main__":
    key = jax.random.PRNGKey(0)
    k_x, k_w, k_g, k_b, k_m, k_v = jax.random.split(key, 6)

    N, Cin, Cout, H, W = 2, 4, 8, 16, 16

    x = jax.random.normal(k_x, (N, Cin, H, W), dtype=jnp.float32)
    # ConvTranspose2d weight layout: (Cin, Cout, 2, 2)
    weight = 0.1 * jax.random.normal(k_w, (Cin, Cout, 2, 2), dtype=jnp.float32)
    gamma = 1.0 + 0.05 * jax.random.normal(k_g, (Cout,), dtype=jnp.float32)
    beta = 0.05 * jax.random.normal(k_b, (Cout,), dtype=jnp.float32)
    running_mean = 0.1 * jax.random.normal(k_m, (Cout,), dtype=jnp.float32)
    running_var = jnp.abs(1.0 + 0.1 * jax.random.normal(k_v, (Cout,), dtype=jnp.float32))

    ref = _reference(x, weight, gamma, beta, running_mean, running_var)

    # f32 path (exact-precision check)
    out = conv_transpose2d_block(x, weight, gamma, beta, running_mean, running_var)
    out = jax.block_until_ready(out)
    assert out.shape == (N, Cout, 2 * H, 2 * W), out.shape
    assert jnp.allclose(out, ref, atol=1e-5, rtol=1e-5), float(jnp.max(jnp.abs(out - ref)))

    # bf16 compute path (bandwidth-optimized for v6e/v7x; looser tolerance)
    out_bf16 = conv_transpose2d_block(x, weight, gamma, beta, running_mean, running_var,
                                      compute_dtype=jnp.bfloat16)
    out_bf16 = jax.block_until_ready(out_bf16)
    assert out_bf16.shape == (N, Cout, 2 * H, 2 * W), out_bf16.shape
    assert jnp.allclose(out_bf16, ref, atol=5e-2, rtol=5e-2), \
        float(jnp.max(jnp.abs(out_bf16 - ref)))

    print("KERNEL_OK")
</pallas_src>

<mosaic_0001>
module attributes {stable_mosaic.version = 11 : i64} {
  func.func @_fused_deconv_bn_relu_kernel(%arg0: i32, %arg1: memref<256x8xf32, #tpu.memory_space<vmem>>, %arg2: memref<8x128xf32, #tpu.memory_space<vmem>>, %arg3: memref<1x128xf32, #tpu.memory_space<vmem>>, %arg4: memref<256x128xf32, #tpu.memory_space<vmem>>) attributes {dimension_semantics = [#tpu.dimension_semantics<parallel>], iteration_bounds = array<i64: 2>, scalar_prefetch = 0 : i64, scratch_operands = 0 : i64, tpu.core_type = #tpu.core_type<tc>, window_params = [{transform_indices = @transform_0, window_bounds = array<i64: 256, 8>}, {pipeline_mode = #tpu.pipeline_mode<synchronous>, transform_indices = @transform_1, window_bounds = array<i64: 8, 128>}, {pipeline_mode = #tpu.pipeline_mode<synchronous>, transform_indices = @transform_2, window_bounds = array<i64: 1, 128>}, {transform_indices = @transform_3, window_bounds = array<i64: 256, 128>}]} {
    %c0 = arith.constant 0 : index
    %c0_0 = arith.constant 0 : index
    %0 = vector.load %arg1[%c0, %c0_0] : memref<256x8xf32, #tpu.memory_space<vmem>>, vector<256x8xf32>
    %c0_1 = arith.constant 0 : index
    %c0_2 = arith.constant 0 : index
    %1 = vector.load %arg2[%c0_1, %c0_2] : memref<8x128xf32, #tpu.memory_space<vmem>>, vector<8x128xf32>
    %cst = arith.constant dense<0.000000e+00> : vector<256x128xf32>
    %2 = tpu.matmul %0, %1, %cst {dimension_numbers = #tpu.dot_dimension_numbers<[1], [0], [0], [1], [0, 0, 1, 1], [], []>} : vector<256x8xf32>, vector<8x128xf32>, vector<256x128xf32> -> vector<256x128xf32>
    %c0_3 = arith.constant 0 : index
    %c0_4 = arith.constant 0 : index
    %3 = vector.load %arg3[%c0_3, %c0_4] : memref<1x128xf32, #tpu.memory_space<vmem>>, vector<1x128xf32>
    %4 = vector.broadcast %3 : vector<1x128xf32> to vector<256x128xf32>
    %5 = arith.addf %2, %4 : vector<256x128xf32>
    %cst_5 = arith.constant 0.000000e+00 : f32
    %6 = vector.broadcast %cst_5 : f32 to vector<256x128xf32>
    %7 = arith.maximumf %5, %6 : vector<256x128xf32>
    %c0_6 = arith.constant 0 : index
    %c0_7 = arith.constant 0 : index
    %8 = vector.load %arg4[%c0_6, %c0_7] : memref<256x128xf32, #tpu.memory_space<vmem>>, vector<256x128xf32>
    tpu.vector_store %arg4[%c0_6, %c0_7], %7 {strides = array<i32>} : memref<256x128xf32, #tpu.memory_space<vmem>>, vector<256x128xf32>,
    return
  }
  func.func @transform_0(%arg0: i32) -> (i32, i32) {
    %c0_i32 = arith.constant 0 : i32
    %c0_i32_0 = arith.constant 0 : i32
    return %arg0, %c0_i32 : i32, i32
  }
  func.func @transform_1(%arg0: i32) -> (i32, i32) {
    %c0_i32 = arith.constant 0 : i32
    %c0_i32_0 = arith.constant 0 : i32
    %c0_i32_1 = arith.constant 0 : i32
    return %c0_i32, %c0_i32_0 : i32, i32
  }
  func.func @transform_2(%arg0: i32) -> (i32, i32) {
    %c0_i32 = arith.constant 0 : i32
    %c0_i32_0 = arith.constant 0 : i32
    %c0_i32_1 = arith.constant 0 : i32
    return %c0_i32, %c0_i32_0 : i32, i32
  }
  func.func @transform_3(%arg0: i32) -> (i32, i32) {
    %c0_i32 = arith.constant 0 : i32
    %c0_i32_0 = arith.constant 0 : i32
    return %arg0, %c0_i32 : i32, i32
  }
}

</mosaic_0001>

<llo_original>
// kernel: tpu_custom_call.1
$region0: #{tpu_custom_call.1}
  #allocation0 [shape = 'u32[]', space=smem, size = 0x4, offset = 0x4, fixed_abs, tag = 'smem constant byte address 0x4 - core index']
  #allocation1 [shape = 'u32[144,128]{1,0:T(1,128)}', space=vmem, size = 0x12000, scoped, tag = 'internal scratch']
  %s0 = inlined_call_operand.vmem [shape: f32[512,8], index: 0, kind: input, shape index: {}]
  %s1 = inlined_call_operand.vmem [shape: f32[8,128], index: 1, kind: input, shape index: {}]
  %s2 = inlined_call_operand.vmem [shape: f32[1,128], index: 2, kind: input, shape index: {}]
  %s3 = inlined_call_operand.hbm [shape: f32[512,128], index: 3, kind: output, shape index: {}]
  %s4 = sld [smem:[#allocation0]]
  $region45: #{tpu_custom_call.1} parent=0
    _
  %s6 = ssub.s32 1, %s4
  %s7 = scalar_select 0, %s6, %s4
  $region1: #{tpu_custom_call.1} parent=0
    #allocation2 [shape = 'u8[262144]{0}', space=vmem, size = 0x40000, scoped, tag = 'output window, operand 0']
    #allocation3 [shape = 's32[2]{0}', space=sflag, size = 0x8, scoped, tag = 'scoped memory for tpu_custom_call.1']
    %8 = vsyncpa [#allocation3], 0
    %s9 = scalar_lea.sflag [#allocation3], 1
    %10 = vsyncpa %s9, 0
    loop: start=0, step=1, limit=4
    $region2: #{tpu_custom_call.1} parent=1 // loop_pre_header
      _
    $region3: #{tpu_custom_call.1} parent=1 // loop_header
      %s12 = sphi 0, %s16
      %p13 = scmp.ge.s32.totalorder %s12, 4
      %s22 = sphi 0, %s24
      %s25 = sphi 0, %s22
      %s26 = sphi 0, %s25
      %s42 = sphi 0, %s26
      %s46 = sphi 0, %s46
      %s48 = sphi 0, %s46
      %s49 = sphi 0, %s48
      %s63 = sphi 0, %s49
      %s67 = sphi 0, %s67
      %s69 = sphi 0, %s67
      %s70 = sphi 0, %s69
      %s84 = sphi 0, %s70
      %s90 = sphi 0, %s92
      %s93 = sphi 0, %s90
      %s94 = sphi 0, %s93
      %s110 = sphi 0, %s94
    $region4: #{tpu_custom_call.1} parent=1 // loop_header_branch
      %15 = sbr.rel (%p13) target = $region8
    $region5: #{tpu_custom_call.1} parent=1 // loop_body
      %s17 = ssub.s32 %s12, 1
      %s18 = ssub.s32 %s12, 2
      %s19 = sadd.s32 %s12, 1
      %s20 = ssub.s32 %s12, %s19
      %p21 = scmp.eq.s32.totalorder %s20, 0
      %s23 = sadd.s32 %s22, 1
      %s24 = scalar_select %p21, %s22, %s23
      %p27 = pneg %p21
      %p28 = scmp.eq.s32.totalorder %s12, 1
      %p29 = por %p27, %p28
      %p30 = scmp.ne.s32.totalorder %s22, %s25
      %p31 = scmp.eq.s32.totalorder %s12, 0
      %p32 = por %p30, %p31
      %p33 = scmp.ne.s32.totalorder %s22, %s25
      %p34 = scmp.eq.s32.totalorder %s17, 1
      %p35 = por %p33, %p34
      %p36 = scmp.ne.s32.totalorder %s25, %s26
      %p37 = scmp.eq.s32.totalorder %s17, 0
      %p38 = por %p36, %p37
      %p39 = scmp.ne.s32.totalorder %s25, %s26
      %p40 = scmp.eq.s32.totalorder %s18, 1
      %p41 = por %p39, %p40
      %p43 = scmp.ne.s32.totalorder %s26, %s42
      %p44 = scmp.eq.s32.totalorder %s18, 0
      %p45 = por %p43, %p44
      %s47 = sadd.s32 %s46, 1
      %p50 = scmp.eq.s32.totalorder %s12, 1
      %p51 = scmp.ne.s32.totalorder %s46, %s48
      %p52 = scmp.eq.s32.totalorder %s12, 0
      %p53 = por %p51, %p52
      %p54 = scmp.ne.s32.totalorder %s46, %s48
      %p55 = scmp.eq.s32.totalorder %s17, 1
      %p56 = por %p54, %p55
      %p57 = scmp.ne.s32.totalorder %s48, %s49
      %p58 = scmp.eq.s32.totalorder %s17, 0
      %p59 = por %p57, %p58
      %p60 = scmp.ne.s32.totalorder %s48, %s49
      %p61 = scmp.eq.s32.totalorder %s18, 1
      %p62 = por %p60, %p61
      %p64 = scmp.ne.s32.totalorder %s49, %s63
      %p65 = scmp.eq.s32.totalorder %s18, 0
      %p66 = por %p64, %p65
      %s68 = sadd.s32 %s67, 1
      %p71 = scmp.eq.s32.totalorder %s12, 1
      %p72 = scmp.ne.s32.totalorder %s67, %s69
      %p73 = scmp.eq.s32.totalorder %s12, 0
      %p74 = por %p72, %p73
      %p75 = scmp.ne.s32.totalorder %s67, %s69
      %p76 = scmp.eq.s32.totalorder %s17, 1
      %p77 = por %p75, %p76
      %p78 = scmp.ne.s32.totalorder %s69, %s70
      %p79 = scmp.eq.s32.totalorder %s17, 0
      %p80 = por %p78, %p79
      %p81 = scmp.ne.s32.totalorder %s69, %s70
      %p82 = scmp.eq.s32.totalorder %s18, 1
      %p83 = por %p81, %p82
      %p85 = scmp.ne.s32.totalorder %s70, %s84
      %p86 = scmp.eq.s32.totalorder %s18, 0
      %p87 = por %p85, %p86
      %s88 = ssub.s32 %s12, %s19
      %p89 = scmp.eq.s32.totalorder %s88, 0
      %s91 = sadd.s32 %s90, 1
      %s92 = scalar_select %p89, %s90, %s91
      %p95 = pneg %p89
      %p96 = scmp.eq.s32.totalorder %s12, 1
      %p97 = por %p95, %p96
      %p98 = scmp.ne.s32.totalorder %s90, %s93
      %p99 = scmp.eq.s32.totalorder %s12, 0
      %p100 = por %p98, %p99
      %p101 = scmp.ne.s32.totalorder %s90, %s93
      %p102 = scmp.eq.s32.totalorder %s17, 1
      %p103 = por %p101, %p102
      %p104 = scmp.ne.s32.totalorder %s93, %s94
      %p105 = scmp.eq.s32.totalorder %s17, 0
      %p106 = por %p104, %p105
      %p107 = scmp.ne.s32.totalorder %s93, %s94
      %p108 = scmp.eq.s32.totalorder %s18, 1
      %p109 = por %p107, %p108
      %p111 = scmp.ne.s32.totalorder %s94, %s110
      %p112 = scmp.eq.s32.totalorder %s18, 0
      %p113 = por %p111, %p112
      %p114 = scmp.le.s32.totalorder 1, %s12
      %p115 = scmp.lt.s32.totalorder %s12, 3
      %p116 = pnand %p114, %p115
      %p117 = pneg %p116
      // Predicated region
      $region9: #{tpu_custom_call.1} parent=5 // pred_check
        _
      $region10: #{tpu_custom_call.1} parent=5 // pred_check_branch
        %119 = sbr.rel (%p116) target = $region12
      $region11: #{tpu_custom_call.1} parent=5 // pred_region
        %s120 = ssub.s32 %s12, 1
        // Predicated region
        $region13: #{tpu_custom_call.1} parent=11 // pred_check
          %p121 = pneg %p59
        $region14: #{tpu_custom_call.1} parent=11 // pred_check_branch
          %123 = sbr.rel (%p121) target = $region16
        $region15: #{tpu_custom_call.1} parent=11 // pred_region
          _
        $region16: #{tpu_custom_call.1} parent=11 // pred_fallthru
          _
        // Predicated region
        $region17: #{tpu_custom_call.1} parent=11 // pred_check
          %p124 = pneg %p80
        $region18: #{tpu_custom_call.1} parent=11 // pred_check_branch
          %126 = sbr.rel (%p124) target = $region20
        $region19: #{tpu_custom_call.1} parent=11 // pred_region
          _
        $region20: #{tpu_custom_call.1} parent=11 // pred_fallthru
          _
      $region12: #{tpu_custom_call.1} parent=5 // pred_fallthru
        _
      %p127 = scmp.lt.s32.totalorder %s12, 2
      // Predicated region
      $region21: #{tpu_custom_call.1} parent=5 // pred_check
        %p128 = pneg %p127
      $region22: #{tpu_custom_call.1} parent=5 // pred_check_branch
        %130 = sbr.rel (%p128) target = $region24
      $region23: #{tpu_custom_call.1} parent=5 // pred_region
        // Predicated region
        $region25: #{tpu_custom_call.1} parent=23 // pred_check
          %p131 = pneg %p32
        $region26: #{tpu_custom_call.1} parent=23 // pred_check_branch
          %133 = sbr.rel (%p131) target = $region28
        $region27: #{tpu_custom_call.1} parent=23 // pred_region
          %s134 = smul.u32 32, %s12
          %p135 = scmp.lt.s32.totalorder %s134, 63
          %s136 = scalar_select %p135, %s134, 63
          %s137 = smul.addr %s136, 8
          %s138 = scalar_lea.vmem %s0, %s137
          %s139 = smul.u32 32, %s12
        $region28: #{tpu_custom_call.1} parent=23 // pred_fallthru
          _
      $region24: #{tpu_custom_call.1} parent=5 // pred_fallthru
        _
      %p140 = scmp.le.s32.totalorder 1, %s12
      %p141 = scmp.lt.s32.totalorder %s12, 3
      %p142 = pnand %p140, %p141
      %p143 = pneg %p142
      // Predicated region
      $region29: #{tpu_custom_call.1} parent=5 // pred_check
        _
      $region30: #{tpu_custom_call.1} parent=5 // pred_check_branch
        %145 = sbr.rel (%p142) target = $region32
      $region31: #{tpu_custom_call.1} parent=5 // pred_region
        %s146 = ssub.s32 %s12, 1
        %s147 = smul.u32 32, %s17
        %p148 = scmp.lt.s32.totalorder %s147, 63
        %s149 = scalar_select %p148, %s147, 63
        %s150 = smul.addr %s149, 8
        %s151 = scalar_lea.vmem %s0, %s150
        %p152 = pneg %p38
        %p153 = pneg %p35
        %p154 = pneg %p59
        %p155 = pneg %p56
        %p156 = pneg %p80
        %p157 = pneg %p77
        %p158 = pneg %p106
        %p159 = pneg %p103
        %s160 = sand.u32 %s93, 1
        %s161 = scalar_lea.sflag [#allocation3], %s160
        %s162 = sand.u32 %s93, 1
        %s163 = smul.addr %s162, 256
        %s164 = scalar_lea.vmem [#allocation2], %s163
        %s165 = smul.u32 32, %s17
        %p166 = scmp.lt.s32.totalorder %s165, 63
        %s167 = scalar_select %p166, %s165, 63
        %s168 = smul.addr %s167, 8
        %s169 = scalar_lea.vmem %s0, %s168
        %s170 = smul.u32 32, %s17
        %s171 = smul.u32 32, %s17
        %v172 = vld [vmem:[%s169] sm:$0xff]
        %v173 = vld [vmem:[%s169 + $0x8] sm:$0xff]
        %v174 = vld [vmem:[%s169 + $0x10] sm:$0xff]
        %v175 = vld [vmem:[%s169 + $0x18] sm:$0xff]
        %v176 = vld [vmem:[%s169 + $0x20] sm:$0xff]
        %v177 = vld [vmem:[%s169 + $0x28] sm:$0xff]
        %v178 = vld [vmem:[%s169 + $0x30] sm:$0xff]
        %v179 = vld [vmem:[%s169 + $0x38] sm:$0xff]
        %v180 = vld [vmem:[%s169 + $0x40] sm:$0xff]
        %v181 = vld [vmem:[%s169 + $0x48] sm:$0xff]
        %v182 = vld [vmem:[%s169 + $0x50] sm:$0xff]
        %v183 = vld [vmem:[%s169 + $0x58] sm:$0xff]
        %v184 = vld [vmem:[%s169 + $0x60] sm:$0xff]
        %v185 = vld [vmem:[%s169 + $0x68] sm:$0xff]
        %v186 = vld [vmem:[%s169 + $0x70] sm:$0xff]
        %v187 = vld [vmem:[%s169 + $0x78] sm:$0xff]
        %v188 = vld [vmem:[%s169 + $0x80] sm:$0xff]
        %v189 = vld [vmem:[%s169 + $0x88] sm:$0xff]
        %v190 = vld [vmem:[%s169 + $0x90] sm:$0xff]
        %v191 = vld [vmem:[%s169 + $0x98] sm:$0xff]
        %v192 = vld [vmem:[%s169 + $0xa0] sm:$0xff]
        %v193 = vld [vmem:[%s169 + $0xa8] sm:$0xff]
        %v194 = vld [vmem:[%s169 + $0xb0] sm:$0xff]
        %v195 = vld [vmem:[%s169 + $0xb8] sm:$0xff]
        %v196 = vld [vmem:[%s169 + $0xc0] sm:$0xff]
        %v197 = vld [vmem:[%s169 + $0xc8] sm:$0xff]
        %v198 = vld [vmem:[%s169 + $0xd0] sm:$0xff]
        %v199 = vld [vmem:[%s169 + $0xd8] sm:$0xff]
        %v200 = vld [vmem:[%s169 + $0xe0] sm:$0xff]
        %v201 = vld [vmem:[%s169 + $0xe8] sm:$0xff]
        %v202 = vld [vmem:[%s169 + $0xf0] sm:$0xff]
        %v203 = vld [vmem:[%s169 + $0xf8] sm:$0xff]
        %v204 = vld [vmem:[%s1] sm:$0xff]
        %v205 = vld [vmem:[%s2] sm:$0x1]
        %v207 = vlaneseq
        %v208 = vshrl.u32 %v207, 7
        %v209 = vsub.s32 0, %v208
        %v210 = vrot.slane %v205, %v209
        %vm212 = vcmask 64512
        %v214 = vsel %vm212, %v172, 0
        %v217 = vsel %vm212, %v173, 0
        %v220 = vsel %vm212, %v174, 0
        %v223 = vsel %vm212, %v175, 0
        %v226 = vsel %vm212, %v176, 0
        %v229 = vsel %vm212, %v177, 0
        %v232 = vsel %vm212, %v178, 0
        %v235 = vsel %vm212, %v179, 0
        %v238 = vsel %vm212, %v180, 0
        %v241 = vsel %vm212, %v181, 0
        %v244 = vsel %vm212, %v182, 0
        %v247 = vsel %vm212, %v183, 0
        %v250 = vsel %vm212, %v184, 0
        %v253 = vsel %vm212, %v185, 0
        %v256 = vsel %vm212, %v186, 0
        %v259 = vsel %vm212, %v187, 0
        %v262 = vsel %vm212, %v188, 0
        %v265 = vsel %vm212, %v189, 0
        %v268 = vsel %vm212, %v190, 0
        %v271 = vsel %vm212, %v191, 0
        %v274 = vsel %vm212, %v192, 0
        %v277 = vsel %vm212, %v193, 0
        %v280 = vsel %vm212, %v194, 0
        %v283 = vsel %vm212, %v195, 0
        %v286 = vsel %vm212, %v196, 0
        %v289 = vsel %vm212, %v197, 0
        %v292 = vsel %vm212, %v198, 0
        %v295 = vsel %vm212, %v199, 0
        %v298 = vsel %vm212, %v200, 0
        %v301 = vsel %vm212, %v201, 0
        %v304 = vsel %vm212, %v202, 0
        %v307 = vsel %vm212, %v203, 0
        %309 = vmatprep.subr.mxu0 0.0
        %310 = vmatpush1.msra.mxu0 0.0
        %311 = vmatprep.subr.mxu0 0.0
        %312 = vmatpush1.msra.mxu0 0.0
        %313 = vmatprep.subr.mxu0 0.0
        %314 = vmatpush1.msra.mxu0 0.0
        %315 = vmatprep.subr.mxu0 0.0
        %316 = vmatpush1.msra.mxu0 0.0
        %317 = vmatprep.subr.mxu0 0.0
        %318 = vmatpush1.msra.mxu0 0.0
        %319 = vmatprep.subr.mxu0 0.0
        %320 = vmatpush1.msra.mxu0 0.0
        %321 = vmatprep.subr.mxu0 0.0
        %322 = vmatpush1.msra.mxu0 0.0
        %323 = vmatprep.subr.mxu0 0.0
        %324 = vmatpush1.msra.mxu0 0.0
        %325 = vmatprep.subr.mxu0 0.0
        %326 = vmatpush1.msra.mxu0 0.0
        %327 = vmatprep.subr.mxu0 0.0
        %328 = vmatpush1.msra.mxu0 0.0
        %329 = vmatprep.subr.mxu0 0.0
        %330 = vmatpush1.msra.mxu0 0.0
        %331 = vmatprep.subr.mxu0 0.0
        %332 = vmatpush1.msra.mxu0 0.0
        %333 = vmatprep.subr.mxu0 0.0
        %334 = vmatpush1.msra.mxu0 0.0
        %335 = vmatprep.subr.mxu0 0.0
        %336 = vmatpush1.msra.mxu0 0.0
        %337 = vmatprep.subr.mxu0 0.0
        %338 = vmatpush1.msra.mxu0 0.0
        %339 = vmatprep.subr.mxu0 0.0
        %340 = vmatpush1.msra.mxu0 %v204
        %341 = vmatprep.subr.mxu0 0.0
        %342 = vmatpush2.msra.mxu0 0.0
        %343 = vmatprep.subr.mxu0 0.0
        %344 = vmatpush2.msra.mxu0 0.0
        %345 = vmatprep.subr.mxu0 0.0
        %346 = vmatpush2.msra.mxu0 0.0
        %347 = vmatprep.subr.mxu0 0.0
        %348 = vmatpush2.msra.mxu0 0.0
        %349 = vmatprep.subr.mxu0 0.0
        %350 = vmatpush2.msra.mxu0 0.0
        %351 = vmatprep.subr.mxu0 0.0
        %352 = vmatpush2.msra.mxu0 0.0
        %353 = vmatprep.subr.mxu0 0.0
        %354 = vmatpush2.msra.mxu0 0.0
        %355 = vmatprep.subr.mxu0 0.0
        %356 = vmatpush2.msra.mxu0 0.0
        %357 = vmatprep.subr.mxu0 0.0
        %358 = vmatpush2.msra.mxu0 0.0
        %359 = vmatprep.subr.mxu0 0.0
        %360 = vmatpush2.msra.mxu0 0.0
        %361 = vmatprep.subr.mxu0 0.0
        %362 = vmatpush2.msra.mxu0 0.0
        %363 = vmatprep.subr.mxu0 0.0
        %364 = vmatpush2.msra.mxu0 0.0
        %365 = vmatprep.subr.mxu0 0.0
        %366 = vmatpush2.msra.mxu0 0.0
        %367 = vmatprep.subr.mxu0 0.0
        %368 = vmatpush2.msra.mxu0 0.0
        %369 = vmatprep.subr.mxu0 0.0
        %370 = vmatpush2.msra.mxu0 0.0
        %371 = vmatprep.subr.mxu0 0.0
        %372 = vmatpush2.msra.mxu0 0.0
        %373 = vmatprep.mubr.f32.mxu0 0.0
        %374 = vmatmul.mubr.f32.gmra.mxu0 %v214
        %v375 = vpop.f32.mrf.mxu0
        %v376 = vadd.f32 %v210, %v375
        %v377 = vpop.f32.mrf.mxu0
        %378 = vmatprep.mubr.f32.mxu0 0.0
        %379 = vmatmul.mubr.f32.gmra.mxu0 %v217
        %v380 = vpop.f32.mrf.mxu0
        %v381 = vadd.f32 %v210, %v380
        %v382 = vpop.f32.mrf.mxu0
        %383 = vmatprep.mubr.f32.mxu0 0.0
        %384 = vmatmul.mubr.f32.gmra.mxu0 %v220
        %v385 = vpop.f32.mrf.mxu0
        %v386 = vadd.f32 %v210, %v385
        %v387 = vpop.f32.mrf.mxu0
        %388 = vmatprep.mubr.f32.mxu0 0.0
        %389 = vmatmul.mubr.f32.gmra.mxu0 %v223
        %v390 = vpop.f32.mrf.mxu0
        %v391 = vadd.f32 %v210, %v390
        %v392 = vpop.f32.mrf.mxu0
        %393 = vmatprep.mubr.f32.mxu0 0.0
        %394 = vmatmul.mubr.f32.gmra.mxu0 %v226
        %v395 = vpop.f32.mrf.mxu0
        %v396 = vadd.f32 %v210, %v395
        %v397 = vpop.f32.mrf.mxu0
        %398 = vmatprep.mubr.f32.mxu0 0.0
        %399 = vmatmul.mubr.f32.gmra.mxu0 %v229
        %v400 = vpop.f32.mrf.mxu0
        %v401 = vadd.f32 %v210, %v400
        %v402 = vpop.f32.mrf.mxu0
        %403 = vmatprep.mubr.f32.mxu0 0.0
        %404 = vmatmul.mubr.f32.gmra.mxu0 %v232
        %v405 = vpop.f32.mrf.mxu0
        %v406 = vadd.f32 %v210, %v405
        %v407 = vpop.f32.mrf.mxu0
        %408 = vmatprep.mubr.f32.mxu0 0.0
        %409 = vmatmul.mubr.f32.gmra.mxu0 %v235
        %v410 = vpop.f32.mrf.mxu0
        %v411 = vadd.f32 %v210, %v410
        %v412 = vpop.f32.mrf.mxu0
        %413 = vmatprep.mubr.f32.mxu0 0.0
        %414 = vmatmul.mubr.f32.gmra.mxu0 %v238
        %v415 = vpop.f32.mrf.mxu0
        %v416 = vadd.f32 %v210, %v415
        %v417 = vpop.f32.mrf.mxu0
        %418 = vmatprep.mubr.f32.mxu0 0.0
        %419 = vmatmul.mubr.f32.gmra.mxu0 %v241
        %v420 = vpop.f32.mrf.mxu0
        %v421 = vadd.f32 %v210, %v420
        %v422 = vpop.f32.mrf.mxu0
        %423 = vmatprep.mubr.f32.mxu0 0.0
        %424 = vmatmul.mubr.f32.gmra.mxu0 %v244
        %v425 = vpop.f32.mrf.mxu0
        %v426 = vadd.f32 %v210, %v425
        %v427 = vpop.f32.mrf.mxu0
        %428 = vmatprep.mubr.f32.mxu0 0.0
        %429 = vmatmul.mubr.f32.gmra.mxu0 %v247
        %v430 = vpop.f32.mrf.mxu0
        %v431 = vadd.f32 %v210, %v430
        %v432 = vpop.f32.mrf.mxu0
        %433 = vmatprep.mubr.f32.mxu0 0.0
        %434 = vmatmul.mubr.f32.gmra.mxu0 %v250
        %v435 = vpop.f32.mrf.mxu0
        %v436 = vadd.f32 %v210, %v435
        %v437 = vpop.f32.mrf.mxu0
        %438 = vmatprep.mubr.f32.mxu0 0.0
        %439 = vmatmul.mubr.f32.gmra.mxu0 %v253
        %v440 = vpop.f32.mrf.mxu0
        %v441 = vadd.f32 %v210, %v440
        %v442 = vpop.f32.mrf.mxu0
        %443 = vmatprep.mubr.f32.mxu0 0.0
        %444 = vmatmul.mubr.f32.gmra.mxu0 %v256
        %v445 = vpop.f32.mrf.mxu0
        %v446 = vadd.f32 %v210, %v445
        %v447 = vpop.f32.mrf.mxu0
        %448 = vmatprep.mubr.f32.mxu0 0.0
        %449 = vmatmul.mubr.f32.gmra.mxu0 %v259
        %v450 = vpop.f32.mrf.mxu0
        %v451 = vadd.f32 %v210, %v450
        %v452 = vpop.f32.mrf.mxu0
        %453 = vmatprep.mubr.f32.mxu0 0.0
        %454 = vmatmul.mubr.f32.gmra.mxu0 %v262
        %v455 = vpop.f32.mrf.mxu0
        %v456 = vadd.f32 %v210, %v455
        %v457 = vpop.f32.mrf.mxu0
        %458 = vmatprep.mubr.f32.mxu0 0.0
        %459 = vmatmul.mubr.f32.gmra.mxu0 %v265
        %v460 = vpop.f32.mrf.mxu0
        %v461 = vadd.f32 %v210, %v460
        %v462 = vpop.f32.mrf.mxu0
        %463 = vmatprep.mubr.f32.mxu0 0.0
        %464 = vmatmul.mubr.f32.gmra.mxu0 %v268
        %v465 = vpop.f32.mrf.mxu0
        %v466 = vadd.f32 %v210, %v465
        %v467 = vpop.f32.mrf.mxu0
        %468 = vmatprep.mubr.f32.mxu0 0.0
        %469 = vmatmul.mubr.f32.gmra.mxu0 %v271
        %v470 = vpop.f32.mrf.mxu0
        %v471 = vadd.f32 %v210, %v470
        %v472 = vpop.f32.mrf.mxu0
        %473 = vmatprep.mubr.f32.mxu0 0.0
        %474 = vmatmul.mubr.f32.gmra.mxu0 %v274
        %v475 = vpop.f32.mrf.mxu0
        %v476 = vadd.f32 %v210, %v475
        %v477 = vpop.f32.mrf.mxu0
        %478 = vmatprep.mubr.f32.mxu0 0.0
        %479 = vmatmul.mubr.f32.gmra.mxu0 %v277
        %v480 = vpop.f32.mrf.mxu0
        %v481 = vadd.f32 %v210, %v480
        %v482 = vpop.f32.mrf.mxu0
        %483 = vmatprep.mubr.f32.mxu0 0.0
        %484 = vmatmul.mubr.f32.gmra.mxu0 %v280
        %v485 = vpop.f32.mrf.mxu0
        %v486 = vadd.f32 %v210, %v485
        %v487 = vpop.f32.mrf.mxu0
        %488 = vmatprep.mubr.f32.mxu0 0.0
        %489 = vmatmul.mubr.f32.gmra.mxu0 %v283
        %v490 = vpop.f32.mrf.mxu0
        %v491 = vadd.f32 %v210, %v490
        %v492 = vpop.f32.mrf.mxu0
        %493 = vmatprep.mubr.f32.mxu0 0.0
        %494 = vmatmul.mubr.f32.gmra.mxu0 %v286
        %v495 = vpop.f32.mrf.mxu0
        %v496 = vadd.f32 %v210, %v495
        %v497 = vpop.f32.mrf.mxu0
        %498 = vmatprep.mubr.f32.mxu0 0.0
        %499 = vmatmul.mubr.f32.gmra.mxu0 %v289
        %v500 = vpop.f32.mrf.mxu0
        %v501 = vadd.f32 %v210, %v500
        %v502 = vpop.f32.mrf.mxu0
        %503 = vmatprep.mubr.f32.mxu0 0.0
        %504 = vmatmul.mubr.f32.gmra.mxu0 %v292
        %v505 = vpop.f32.mrf.mxu0
        %v506 = vadd.f32 %v210, %v505
        %v507 = vpop.f32.mrf.mxu0
        %508 = vmatprep.mubr.f32.mxu0 0.0
        %509 = vmatmul.mubr.f32.gmra.mxu0 %v295
        %v510 = vpop.f32.mrf.mxu0
        %v511 = vadd.f32 %v210, %v510
        %v512 = vpop.f32.mrf.mxu0
        %513 = vmatprep.mubr.f32.mxu0 0.0
        %514 = vmatmul.mubr.f32.gmra.mxu0 %v298
        %v515 = vpop.f32.mrf.mxu0
        %v516 = vadd.f32 %v210, %v515
        %v517 = vpop.f32.mrf.mxu0
        %518 = vmatprep.mubr.f32.mxu0 0.0
        %519 = vmatmul.mubr.f32.gmra.mxu0 %v301
        %v520 = vpop.f32.mrf.mxu0
        %v521 = vadd.f32 %v210, %v520
        %v522 = vpop.f32.mrf.mxu0
        %523 = vmatprep.mubr.f32.mxu0 0.0
        %524 = vmatmul.mubr.f32.gmra.mxu0 %v304
        %v525 = vpop.f32.mrf.mxu0
        %v526 = vadd.f32 %v210, %v525
        %v527 = vpop.f32.mrf.mxu0
        %528 = vmatprep.mubr.f32.mxu0 0.0
        %529 = vmatmul.mubr.f32.gmra.mxu0 %v307
        %v530 = vpop.f32.mrf.mxu0
        %v531 = vadd.f32 %v210, %v530
        %v532 = vpop.f32.mrf.mxu0
        %533 = vdwg.mxu0
        %v534 = vmax.f32 %v376, 0.0
        %v535 = vmax.f32 %v381, 0.0
        %v536 = vmax.f32 %v386, 0.0
        %v537 = vmax.f32 %v391, 0.0
        %v538 = vmax.f32 %v396, 0.0
        %v539 = vmax.f32 %v401, 0.0
        %v540 = vmax.f32 %v406, 0.0
        %v541 = vmax.f32 %v411, 0.0
        %v542 = vmax.f32 %v416, 0.0
        %v543 = vmax.f32 %v421, 0.0
        %v544 = vmax.f32 %v426, 0.0
        %v545 = vmax.f32 %v431, 0.0
        %v546 = vmax.f32 %v436, 0.0
        %v547 = vmax.f32 %v441, 0.0
        %v548 = vmax.f32 %v446, 0.0
        %v549 = vmax.f32 %v451, 0.0
        %v550 = vmax.f32 %v456, 0.0
        %v551 = vmax.f32 %v461, 0.0
        %v552 = vmax.f32 %v466, 0.0
        %v553 = vmax.f32 %v471, 0.0
        %v554 = vmax.f32 %v476, 0.0
        %v555 = vmax.f32 %v481, 0.0
        %v556 = vmax.f32 %v486, 0.0
        %v557 = vmax.f32 %v491, 0.0
        %v558 = vmax.f32 %v496, 0.0
        %v559 = vmax.f32 %v501, 0.0
        %v560 = vmax.f32 %v506, 0.0
        %v561 = vmax.f32 %v511, 0.0
        %v562 = vmax.f32 %v516, 0.0
        %v563 = vmax.f32 %v521, 0.0
        %v564 = vmax.f32 %v526, 0.0
        %v565 = vmax.f32 %v531, 0.0
        %566 = vst [vmem:[%s164] sm:$0xff] %v534
        %567 = vst [vmem:[%s164 + $0x8] sm:$0xff] %v535
        %568 = vst [vmem:[%s164 + $0x10] sm:$0xff] %v536
        %569 = vst [vmem:[%s164 + $0x18] sm:$0xff] %v537
        %570 = vst [vmem:[%s164 + $0x20] sm:$0xff] %v538
        %571 = vst [vmem:[%s164 + $0x28] sm:$0xff] %v539
        %572 = vst [vmem:[%s164 + $0x30] sm:$0xff] %v540
        %573 = vst [vmem:[%s164 + $0x38] sm:$0xff] %v541
        %574 = vst [vmem:[%s164 + $0x40] sm:$0xff] %v542
        %575 = vst [vmem:[%s164 + $0x48] sm:$0xff] %v543
        %576 = vst [vmem:[%s164 + $0x50] sm:$0xff] %v544
        %577 = vst [vmem:[%s164 + $0x58] sm:$0xff] %v545
        %578 = vst [vmem:[%s164 + $0x60] sm:$0xff] %v546
        %579 = vst [vmem:[%s164 + $0x68] sm:$0xff] %v547
        %580 = vst [vmem:[%s164 + $0x70] sm:$0xff] %v548
        %581 = vst [vmem:[%s164 + $0x78] sm:$0xff] %v549
        %582 = vst [vmem:[%s164 + $0x80] sm:$0xff] %v550
        %583 = vst [vmem:[%s164 + $0x88] sm:$0xff] %v551
        %584 = vst [vmem:[%s164 + $0x90] sm:$0xff] %v552
        %585 = vst [vmem:[%s164 + $0x98] sm:$0xff] %v553
        %586 = vst [vmem:[%s164 + $0xa0] sm:$0xff] %v554
        %587 = vst [vmem:[%s164 + $0xa8] sm:$0xff] %v555
        %588 = vst [vmem:[%s164 + $0xb0] sm:$0xff] %v556
        %589 = vst [vmem:[%s164 + $0xb8] sm:$0xff] %v557
        %590 = vst [vmem:[%s164 + $0xc0] sm:$0xff] %v558
        %591 = vst [vmem:[%s164 + $0xc8] sm:$0xff] %v559
        %592 = vst [vmem:[%s164 + $0xd0] sm:$0xff] %v560
        %593 = vst [vmem:[%s164 + $0xd8] sm:$0xff] %v561
        %594 = vst [vmem:[%s164 + $0xe0] sm:$0xff] %v562
        %595 = vst [vmem:[%s164 + $0xe8] sm:$0xff] %v563
        %596 = vst [vmem:[%s164 + $0xf0] sm:$0xff] %v564
        %597 = vst [vmem:[%s164 + $0xf8] sm:$0xff] %v565
        %s598 = sand.u32 %s93, 1
        %s599 = scalar_lea.sflag [#allocation3], %s598
        %s600 = sand.u32 %s93, 1
        %s601 = smul.addr %s600, 256
        %s602 = scalar_lea.vmem [#allocation2], %s601
        // Predicated region
        $region33: #{tpu_custom_call.1} parent=31 // pred_check
          %p603 = pneg %p103
        $region34: #{tpu_custom_call.1} parent=31 // pred_check_branch
          %605 = sbr.rel (%p603) target = $region36
        $region35: #{tpu_custom_call.1} parent=31 // pred_region
          %s606 = smul.u32 32, %s17
          %s608 = ssub.s32 4096, 4096
          %609 = vsyncadd %s599, %s608
          %s610 = smul.addr %s606, 128
          %s611 = scalar_lea.hbm %s3, %s610
          %s612 = sshll.u32 %s602, 4
          %s613 = int_to_ptr.vmem [resolvable:$true] %s612
          %618 = dma.vmem_to_hbm [thread:$0]  %s613, 4096, %s611, %s599, 128, 128, 8
        $region36: #{tpu_custom_call.1} parent=31 // pred_fallthru
          _
      $region32: #{tpu_custom_call.1} parent=5 // pred_fallthru
        _
      %p619 = scmp.le.s32.totalorder 2, %s12
      // Predicated region
      $region37: #{tpu_custom_call.1} parent=5 // pred_check
        %p620 = pneg %p619
      $region38: #{tpu_custom_call.1} parent=5 // pred_check_branch
        %622 = sbr.rel (%p620) target = $region40
      $region39: #{tpu_custom_call.1} parent=5 // pred_region
        %s623 = ssub.s32 %s12, 2
        // Predicated region
        $region41: #{tpu_custom_call.1} parent=39 // pred_check
          %p624 = pneg %p109
        $region42: #{tpu_custom_call.1} parent=39 // pred_check_branch
          %626 = sbr.rel (%p624) target = $region44
        $region43: #{tpu_custom_call.1} parent=39 // pred_region
          %s627 = sand.u32 %s94, 1
          %s628 = scalar_lea.sflag [#allocation3], %s627
          %s629 = sand.u32 %s94, 1
          %s630 = smul.addr %s629, 256
          %s631 = scalar_lea.vmem [#allocation2], %s630
          %632 = dma.done %s628, 4096
        $region44: #{tpu_custom_call.1} parent=39 // pred_fallthru
          _
      $region40: #{tpu_custom_call.1} parent=5 // pred_fallthru
        _
    $region6: #{tpu_custom_call.1} parent=1 // loop_footer
      %s16 = sadd.s32 1, %s12
    $region7: #{tpu_custom_call.1} parent=1 // loop_footer_branch
      %11 = sbr.rel target = $region3
    $region8: #{tpu_custom_call.1} parent=1 // loop_exit
      _
    %633 = vsyncpa [#allocation3], 1
    %s634 = scalar_lea.sflag [#allocation3], 1
    %635 = vsyncpa %s634, 1

</llo_original>
